<compile_context>
chip_gen: v7x
topology: tpu7x:2x2x1
jax: 0.10.0
libtpu: 0.0.40
codegen_flags: <defaults>
</compile_context>

<pallas_src>
import jax
import jax.numpy as jnp
from jax.experimental import pallas as pl
from jax.experimental.pallas import tpu as pltpu


def _round_up(x, m):
    return (x + m - 1) // m * m


def gauss_kernel(x_ref, w1_ref, b1_ref, whead_ref, bhead_ref, mu_ref, sig_ref):
    # Stage 1: h = tanh(x @ W1 + b1)   (MXU matmul, tanh on EUP, f32 accumulate)
    h = jnp.tanh(
        jnp.dot(x_ref[...], w1_ref[...], preferred_element_type=jnp.float32)
        + b1_ref[...]
    )
    # Stage 2: fused head — one MXU matmul produces [mu | logsig] at a
    # lane-dense width (2 * padded_latent, a multiple of 128).
    fused = (
        jnp.dot(h, whead_ref[...], preferred_element_type=jnp.float32)
        + bhead_ref[...]
    )
    lp = mu_ref.shape[-1]                 # padded latent width (multiple of 128)
    mu = fused[:, :lp]                    # slice boundaries are 128-aligned -> no copy
    logsig = fused[:, lp:]
    # Numerically stable softplus: max(x, 0) + log1p(exp(-|x|))  (exp on EUP)
    sig = jnp.maximum(logsig, 0.0) + jnp.log1p(jnp.exp(-jnp.abs(logsig)))
    mu_ref[...] = mu.astype(mu_ref.dtype)
    sig_ref[...] = sig.astype(sig_ref.dtype)


def gauss_layer(x, w1, b1, wmu, bmu, wsig, bsig, *, max_tm=512):
    """GaussLayer forward.

    x: (B, inputs). Weights are stored transposed vs torch.nn.Linear, i.e.
    (in_features, out_features). Returns (mu, sig), each (B, latent).
    """
    B, n_in = x.shape
    hidden = w1.shape[1]
    latent = wmu.shape[1]
    dtype = x.dtype
    itemsize = jnp.dtype(dtype).itemsize

    # ---- Fused, lane-dense head parameters: [Wmu | Wsig], each half padded ----
    lp = _round_up(latent, 128)
    whead = jnp.zeros((hidden, 2 * lp), dtype=w1.dtype)
    whead = whead.at[:, :latent].set(wmu).at[:, lp:lp + latent].set(wsig)
    bhead = jnp.zeros((1, 2 * lp), dtype=b1.dtype)
    bhead = bhead.at[0, :latent].set(bmu).at[0, lp:lp + latent].set(bsig)
    b1_2d = b1.reshape(1, hidden)

    weight_bytes = itemsize * (w1.size + b1_2d.size + whead.size + bhead.size)

    # ---- Row tile: as large as a conservative VMEM budget allows -------------
    # Budget keeps double-buffered x/outputs + resident weights well inside
    # v7x's 64 MiB VMEM (v5e/v6e have 128 MiB, so this is safe everywhere).
    # TODO(synk): if n_in/hidden grow to the thousands, add a K-tiling grid axis
    # with an accumulator scratch instead of keeping W1 fully resident.
    budget = 24 * 1024 * 1024
    tm = max(8, min(_round_up(B, 8), max_tm))
    while tm > 8:
        tile_bytes = itemsize * (2 * tm * n_in + 2 * 2 * tm * lp)
        if weight_bytes + tile_bytes <= budget:
            break
        tm = max(8, _round_up(tm // 2, 8))

    # Ragged batches: zero-pad rows up to a multiple of tm.
    b_pad = _round_up(B, tm)
    x_in = jnp.pad(x, ((0, b_pad - B), (0, 0))) if b_pad != B else x
    grid = (b_pad // tm,)

    tile_bytes = itemsize * (2 * tm * n_in + 2 * 2 * tm * lp)
    vmem_limit = int(min(max(2 * (weight_bytes + tile_bytes), 16 * 2**20),
                         48 * 2**20))

    cost = pl.CostEstimate(
        flops=int(2 * B * n_in * hidden + 2 * B * hidden * 2 * latent),
        transcendentals=int(B * (hidden + 2 * latent)),
        bytes_accessed=int(itemsize * (x.size + w1.size + b1_2d.size
                                       + whead.size + bhead.size
                                       + 2 * B * latent)),
    )

    def wspec(shape):
        # Grid-invariant operand: constant index_map, so the pipeliner does
        # not re-DMA it across grid steps.
        return pl.BlockSpec(shape, lambda i: (0, 0))

    mu_p, sig_p = pl.pallas_call(
        gauss_kernel,
        out_shape=(
            jax.ShapeDtypeStruct((b_pad, lp), dtype),
            jax.ShapeDtypeStruct((b_pad, lp), dtype),
        ),
        grid_spec=pltpu.PrefetchScalarGridSpec(
            num_scalar_prefetch=0,
            grid=grid,
            in_specs=[
                pl.BlockSpec((tm, n_in), lambda i: (i, 0)),   # x row tile
                wspec((n_in, hidden)),                        # W1
                wspec((1, hidden)),                           # b1
                wspec((hidden, 2 * lp)),                      # [Wmu | Wsig] padded
                wspec((1, 2 * lp)),                           # [bmu | bsig] padded
            ],
            out_specs=[
                pl.BlockSpec((tm, lp), lambda i: (i, 0)),     # mu  (128-lane dense)
                pl.BlockSpec((tm, lp), lambda i: (i, 0)),     # sig (128-lane dense)
            ],
        ),
        compiler_params=pltpu.CompilerParams(
            dimension_semantics=("parallel",),
            vmem_limit_bytes=vmem_limit,
        ),
        cost_estimate=cost,
    )(x_in, w1, b1_2d, whead, bhead)

    return mu_p[:B, :latent], sig_p[:B, :latent]


def reference(x, w1, b1, wmu, bmu, wsig, bsig):
    h = jnp.tanh(x @ w1 + b1)
    mu = h @ wmu + bmu
    sig = jax.nn.softplus(h @ wsig + bsig)
    return mu, sig


if __name__ == "__main__":
    # Small shapes consistent with GaussLayer(inputs, hidden_size, latent_z)
    batch, inputs, hidden_size, latent_z = 16, 32, 32, 16

    key = jax.random.PRNGKey(0)
    k = jax.random.split(key, 7)
    x = jax.random.normal(k[0], (batch, inputs), dtype=jnp.float32)

    # PyTorch Linear weight is (out, in); we store (in, out).
    w1 = jax.random.normal(k[1], (inputs, hidden_size), dtype=jnp.float32) * 0.1
    b1 = jax.random.normal(k[2], (hidden_size,), dtype=jnp.float32) * 0.1
    wmu = jax.random.normal(k[3], (hidden_size, latent_z), dtype=jnp.float32) * 0.1
    bmu = jax.random.normal(k[4], (latent_z,), dtype=jnp.float32) * 0.1
    wsig = jax.random.normal(k[5], (hidden_size, latent_z), dtype=jnp.float32) * 0.1
    bsig = jax.random.normal(k[6], (latent_z,), dtype=jnp.float32) * 0.1

    mu, sig = gauss_layer(x, w1, b1, wmu, bmu, wsig, bsig)
    jax.block_until_ready((mu, sig))

    mu_ref, sig_ref = reference(x, w1, b1, wmu, bmu, wsig, bsig)
    assert mu.shape == mu_ref.shape and sig.shape == sig_ref.shape
    assert jnp.allclose(mu, mu_ref, atol=1e-5, rtol=1e-5), "mu mismatch"
    assert jnp.allclose(sig, sig_ref, atol=1e-5, rtol=1e-5), "sig mismatch"

    print("KERNEL_OK")
</pallas_src>

<mosaic_0001>
module attributes {stable_mosaic.version = 11 : i64} {
  func.func @gauss_kernel(%arg0: i32, %arg1: memref<16x32xf32, #tpu.memory_space<vmem>>, %arg2: memref<32x32xf32, #tpu.memory_space<vmem>>, %arg3: memref<1x32xf32, #tpu.memory_space<vmem>>, %arg4: memref<32x256xf32, #tpu.memory_space<vmem>>, %arg5: memref<1x256xf32, #tpu.memory_space<vmem>>, %arg6: memref<16x128xf32, #tpu.memory_space<vmem>>, %arg7: memref<16x128xf32, #tpu.memory_space<vmem>>) attributes {dimension_semantics = [#tpu.dimension_semantics<parallel>], iteration_bounds = array<i64: 1>, scalar_prefetch = 0 : i64, scratch_operands = 0 : i64, tpu.core_type = #tpu.core_type<tc>, window_params = [{transform_indices = @transform_0, window_bounds = array<i64: 16, 32>}, {pipeline_mode = #tpu.pipeline_mode<synchronous>, transform_indices = @transform_1, window_bounds = array<i64: 32, 32>}, {pipeline_mode = #tpu.pipeline_mode<synchronous>, transform_indices = @transform_2, window_bounds = array<i64: 1, 32>}, {pipeline_mode = #tpu.pipeline_mode<synchronous>, transform_indices = @transform_3, window_bounds = array<i64: 32, 256>}, {pipeline_mode = #tpu.pipeline_mode<synchronous>, transform_indices = @transform_4, window_bounds = array<i64: 1, 256>}, {transform_indices = @transform_5, window_bounds = array<i64: 16, 128>}, {transform_indices = @transform_6, window_bounds = array<i64: 16, 128>}]} {
    %c0 = arith.constant 0 : index
    %c0_0 = arith.constant 0 : index
    %0 = vector.load %arg1[%c0, %c0_0] : memref<16x32xf32, #tpu.memory_space<vmem>>, vector<16x32xf32>
    %c0_1 = arith.constant 0 : index
    %c0_2 = arith.constant 0 : index
    %1 = vector.load %arg2[%c0_1, %c0_2] : memref<32x32xf32, #tpu.memory_space<vmem>>, vector<32x32xf32>
    %cst = arith.constant dense<0.000000e+00> : vector<16x32xf32>
    %2 = tpu.matmul %0, %1, %cst {dimension_numbers = #tpu.dot_dimension_numbers<[1], [0], [0], [1], [0, 0, 1, 1], [], []>} : vector<16x32xf32>, vector<32x32xf32>, vector<16x32xf32> -> vector<16x32xf32>
    %c0_3 = arith.constant 0 : index
    %c0_4 = arith.constant 0 : index
    %3 = vector.load %arg3[%c0_3, %c0_4] : memref<1x32xf32, #tpu.memory_space<vmem>>, vector<1x32xf32>
    %4 = vector.broadcast %3 : vector<1x32xf32> to vector<16x32xf32>
    %5 = arith.addf %2, %4 : vector<16x32xf32>
    %6 = math.tanh %5 : vector<16x32xf32>
    %c0_5 = arith.constant 0 : index
    %c0_6 = arith.constant 0 : index
    %7 = vector.load %arg4[%c0_5, %c0_6] : memref<32x256xf32, #tpu.memory_space<vmem>>, vector<32x256xf32>
    %cst_7 = arith.constant dense<0.000000e+00> : vector<16x256xf32>
    %8 = tpu.matmul %6, %7, %cst_7 {dimension_numbers = #tpu.dot_dimension_numbers<[1], [0], [0], [1], [0, 0, 1, 1], [], []>} : vector<16x32xf32>, vector<32x256xf32>, vector<16x256xf32> -> vector<16x256xf32>
    %c0_8 = arith.constant 0 : index
    %c0_9 = arith.constant 0 : index
    %9 = vector.load %arg5[%c0_8, %c0_9] : memref<1x256xf32, #tpu.memory_space<vmem>>, vector<1x256xf32>
    %10 = vector.broadcast %9 : vector<1x256xf32> to vector<16x256xf32>
    %11 = arith.addf %8, %10 : vector<16x256xf32>
    %12 = vector.extract_strided_slice %11 {offsets = [0, 0], sizes = [16, 128], strides = [1, 1]} : vector<16x256xf32> to vector<16x128xf32>
    %13 = vector.extract_strided_slice %11 {offsets = [0, 128], sizes = [16, 128], strides = [1, 1]} : vector<16x256xf32> to vector<16x128xf32>
    %cst_10 = arith.constant 0.000000e+00 : f32
    %14 = vector.broadcast %cst_10 : f32 to vector<16x128xf32>
    %15 = arith.maximumf %13, %14 : vector<16x128xf32>
    %16 = math.absf %13 : vector<16x128xf32>
    %cst_11 = arith.constant 0.000000e+00 : f32
    %17 = vector.broadcast %cst_11 : f32 to vector<16x128xf32>
    %18 = arith.subf %17, %16 : vector<16x128xf32>
    %19 = math.exp %18 : vector<16x128xf32>
    %20 = math.log1p %19 : vector<16x128xf32>
    %21 = arith.addf %15, %20 : vector<16x128xf32>
    %c0_12 = arith.constant 0 : index
    %c0_13 = arith.constant 0 : index
    %22 = vector.load %arg6[%c0_12, %c0_13] : memref<16x128xf32, #tpu.memory_space<vmem>>, vector<16x128xf32>
    tpu.vector_store %arg6[%c0_12, %c0_13], %12 {strides = array<i32>} : memref<16x128xf32, #tpu.memory_space<vmem>>, vector<16x128xf32>,
    %c0_14 = arith.constant 0 : index
    %c0_15 = arith.constant 0 : index
    %23 = vector.load %arg7[%c0_14, %c0_15] : memref<16x128xf32, #tpu.memory_space<vmem>>, vector<16x128xf32>
    tpu.vector_store %arg7[%c0_14, %c0_15], %21 {strides = array<i32>} : memref<16x128xf32, #tpu.memory_space<vmem>>, vector<16x128xf32>,
    return
  }
  func.func @transform_0(%arg0: i32) -> (i32, i32) {
    %c0_i32 = arith.constant 0 : i32
    %c0_i32_0 = arith.constant 0 : i32
    return %arg0, %c0_i32 : i32, i32
  }
  func.func @transform_1(%arg0: i32) -> (i32, i32) {
    %c0_i32 = arith.constant 0 : i32
    %c0_i32_0 = arith.constant 0 : i32
    %c0_i32_1 = arith.constant 0 : i32
    return %c0_i32, %c0_i32_0 : i32, i32
  }
  func.func @transform_2(%arg0: i32) -> (i32, i32) {
    %c0_i32 = arith.constant 0 : i32
    %c0_i32_0 = arith.constant 0 : i32
    %c0_i32_1 = arith.constant 0 : i32
    return %c0_i32, %c0_i32_0 : i32, i32
  }
  func.func @transform_3(%arg0: i32) -> (i32, i32) {
    %c0_i32 = arith.constant 0 : i32
    %c0_i32_0 = arith.constant 0 : i32
    %c0_i32_1 = arith.constant 0 : i32
    return %c0_i32, %c0_i32_0 : i32, i32
  }
  func.func @transform_4(%arg0: i32) -> (i32, i32) {
    %c0_i32 = arith.constant 0 : i32
    %c0_i32_0 = arith.constant 0 : i32
    %c0_i32_1 = arith.constant 0 : i32
    return %c0_i32, %c0_i32_0 : i32, i32
  }
  func.func @transform_5(%arg0: i32) -> (i32, i32) {
    %c0_i32 = arith.constant 0 : i32
    %c0_i32_0 = arith.constant 0 : i32
    return %arg0, %c0_i32 : i32, i32
  }
  func.func @transform_6(%arg0: i32) -> (i32, i32) {
    %c0_i32 = arith.constant 0 : i32
    %c0_i32_0 = arith.constant 0 : i32
    return %arg0, %c0_i32 : i32, i32
  }
}

</mosaic_0001>

<llo_original>
// kernel: tpu_custom_call.1
$region0: #{tpu_custom_call.1}
  #allocation0 [shape = 'u32[]', space=smem, size = 0x4, offset = 0x4, fixed_abs, tag = 'smem constant byte address 0x4 - core index']
  #allocation1 [shape = 'u32[144,128]{1,0:T(1,128)}', space=vmem, size = 0x12000, scoped, tag = 'internal scratch']
  %s0 = inlined_call_operand.hbm [shape: f32[16,32], index: 0, kind: input, shape index: {}]
  %s1 = inlined_call_operand.hbm [shape: f32[32,32], index: 1, kind: input, shape index: {}]
  %s2 = inlined_call_operand.vmem [shape: f32[1,32], index: 2, kind: input, shape index: {}]
  %s3 = inlined_call_operand.hbm [shape: f32[32,256], index: 3, kind: input, shape index: {}]
  %s4 = inlined_call_operand.vmem [shape: f32[1,256], index: 4, kind: input, shape index: {}]
  %s5 = inlined_call_operand.hbm [shape: f32[16,128], index: 5, kind: output, shape index: {0}]
  %s6 = inlined_call_operand.hbm [shape: f32[16,128], index: 6, kind: output, shape index: {1}]
  %7 = xla_tuple %s5, %s6
  %s8 = sld [smem:[#allocation0]]
  $region50: #{tpu_custom_call.1} parent=0
    _
  %s10 = ssub.s32 1, %s8
  %s11 = scalar_select 0, %s10, %s8
  $region1: #{tpu_custom_call.1} parent=0
    #allocation2 [shape = 'u8[8192]{0}', space=vmem, size = 0x2000, scoped, tag = 'input window, operand 0, single buffered']
    #allocation3 [shape = 's32[1]{0}', space=sflag, size = 0x4, scoped, tag = 'scoped memory for tpu_custom_call.1']
    #allocation4 [shape = 's32[1]{0}', space=sflag, size = 0x4, scoped, tag = 'scoped memory for tpu_custom_call.1']
    #allocation5 [shape = 'u8[16384]{0}', space=vmem, size = 0x4000, scoped, tag = 'input window, operand 1, single buffered']
    #allocation6 [shape = 's32[1]{0}', space=sflag, size = 0x4, scoped, tag = 'scoped memory for tpu_custom_call.1']
    #allocation7 [shape = 'u8[32768]{0}', space=vmem, size = 0x8000, scoped, tag = 'input window, operand 3, single buffered']
    #allocation8 [shape = 'u8[8192]{0}', space=vmem, size = 0x2000, scoped, tag = 'output window, operand 0, single buffered']
    #allocation9 [shape = 'u8[8192]{0}', space=vmem, size = 0x2000, scoped, tag = 'output window, operand 1, single buffered']
    #allocation10 [shape = 's32[1]{0}', space=sflag, size = 0x4, scoped, tag = 'scoped memory for tpu_custom_call.1']
    %12 = vsyncpa [#allocation3], 0
    %13 = vsyncpa [#allocation6], 0
    %14 = vsyncpa [#allocation4], 0
    %15 = vsyncpa [#allocation10], 0
    // Predicated region
    $region2: #{tpu_custom_call.1} parent=1 // pred_check
      _
    $region3: #{tpu_custom_call.1} parent=1 // pred_check_branch
      %17 = sbr.rel (0) target = $region5
    $region4: #{tpu_custom_call.1} parent=1 // pred_region
      %s19 = ssub.s32 256, 256
      %20 = vsyncadd [#allocation3], %s19
      %s21 = sshll.u32 [#allocation2], 4
      %s22 = int_to_ptr.vmem [resolvable:$true] %s21
      %27 = dma.hbm_to_vmem [thread:$0]  %s0, 256, %s22, [#allocation3], 128, 128, 8
    $region5: #{tpu_custom_call.1} parent=1 // pred_fallthru
      _
    // Predicated region
    $region6: #{tpu_custom_call.1} parent=1 // pred_check
      _
    $region7: #{tpu_custom_call.1} parent=1 // pred_check_branch
      %29 = sbr.rel (0) target = $region9
    $region8: #{tpu_custom_call.1} parent=1 // pred_region
      %s31 = ssub.s32 512, 512
      %32 = vsyncadd [#allocation6], %s31
      %s33 = sshll.u32 [#allocation5], 4
      %s34 = int_to_ptr.vmem [resolvable:$true] %s33
      %39 = dma.hbm_to_vmem [thread:$0]  %s1, 512, %s34, [#allocation6], 128, 128, 8
    $region9: #{tpu_custom_call.1} parent=1 // pred_fallthru
      _
    // Predicated region
    $region10: #{tpu_custom_call.1} parent=1 // pred_check
      _
    $region11: #{tpu_custom_call.1} parent=1 // pred_check_branch
      %41 = sbr.rel (0) target = $region13
    $region12: #{tpu_custom_call.1} parent=1 // pred_region
      _
    $region13: #{tpu_custom_call.1} parent=1 // pred_fallthru
      _
    // Predicated region
    $region14: #{tpu_custom_call.1} parent=1 // pred_check
      _
    $region15: #{tpu_custom_call.1} parent=1 // pred_check_branch
      %43 = sbr.rel (0) target = $region17
    $region16: #{tpu_custom_call.1} parent=1 // pred_region
      %s45 = ssub.s32 1024, 1024
      %46 = vsyncadd [#allocation6], %s45
      %s47 = sshll.u32 [#allocation7], 4
      %s48 = int_to_ptr.vmem [resolvable:$true] %s47
      %53 = dma.hbm_to_vmem [thread:$0]  %s3, 1024, %s48, [#allocation6], 256, 256, 16
    $region17: #{tpu_custom_call.1} parent=1 // pred_fallthru
      _
    // Predicated region
    $region18: #{tpu_custom_call.1} parent=1 // pred_check
      _
    $region19: #{tpu_custom_call.1} parent=1 // pred_check_branch
      %55 = sbr.rel (0) target = $region21
    $region20: #{tpu_custom_call.1} parent=1 // pred_region
      _
    $region21: #{tpu_custom_call.1} parent=1 // pred_fallthru
      _
    // Predicated region
    $region22: #{tpu_custom_call.1} parent=1 // pred_check
      _
    $region23: #{tpu_custom_call.1} parent=1 // pred_check_branch
      %57 = sbr.rel (0) target = $region25
    $region24: #{tpu_custom_call.1} parent=1 // pred_region
      %58 = dma.done [#allocation3], 256
    $region25: #{tpu_custom_call.1} parent=1 // pred_fallthru
      _
    // Predicated region
    $region26: #{tpu_custom_call.1} parent=1 // pred_check
      _
    $region27: #{tpu_custom_call.1} parent=1 // pred_check_branch
      %60 = sbr.rel (0) target = $region29
    $region28: #{tpu_custom_call.1} parent=1 // pred_region
      %61 = dma.done [#allocation6], 512
    $region29: #{tpu_custom_call.1} parent=1 // pred_fallthru
      _
    // Predicated region
    $region30: #{tpu_custom_call.1} parent=1 // pred_check
      _
    $region31: #{tpu_custom_call.1} parent=1 // pred_check_branch
      %63 = sbr.rel (0) target = $region33
    $region32: #{tpu_custom_call.1} parent=1 // pred_region
      %64 = dma.done [#allocation6], 1024
    $region33: #{tpu_custom_call.1} parent=1 // pred_fallthru
      _
    %v65 = vld [vmem:[#allocation2] sm:$0xff]
    %v66 = vld [vmem:[#allocation2 + $0x8] sm:$0xff]
    %v67 = vld [vmem:[#allocation5] sm:$0xff]
    %v68 = vld [vmem:[#allocation5 + $0x8] sm:$0xff]
    %v69 = vld [vmem:[#allocation5 + $0x10] sm:$0xff]
    %v70 = vld [vmem:[#allocation5 + $0x18] sm:$0xff]
    %v71 = vld [vmem:[%s2] sm:$0x1]
    %v73 = vlaneseq
    %v74 = vshrl.u32 %v73, 7
    %v75 = vsub.s32 0, %v74
    %v76 = vrot.slane %v71, %v75
    %vm78 = vcmask 261120
    %v80 = vsel %vm78, %v65, 0
    %v83 = vsel %vm78, %v66, 0
    %85 = vmatprep.subr.mxu0 0.0
    %86 = vmatpush1.msra.mxu0 %v67
    %87 = vmatprep.subr.mxu0 0.0
    %88 = vmatpush1.msra.mxu0 %v68
    %89 = vmatprep.subr.mxu0 0.0
    %90 = vmatpush1.msra.mxu0 %v69
    %91 = vmatprep.subr.mxu0 0.0
    %92 = vmatpush1.msra.mxu0 %v70
    %93 = vmatprep.subr.mxu0 0.0
    %94 = vmatpush1.msra.mxu0 0.0
    %95 = vmatprep.subr.mxu0 0.0
    %96 = vmatpush1.msra.mxu0 0.0
    %97 = vmatprep.subr.mxu0 0.0
    %98 = vmatpush1.msra.mxu0 0.0
    %99 = vmatprep.subr.mxu0 0.0
    %100 = vmatpush1.msra.mxu0 0.0
    %101 = vmatprep.subr.mxu0 0.0
    %102 = vmatpush1.msra.mxu0 0.0
    %103 = vmatprep.subr.mxu0 0.0
    %104 = vmatpush1.msra.mxu0 0.0
    %105 = vmatprep.subr.mxu0 0.0
    %106 = vmatpush1.msra.mxu0 0.0
    %107 = vmatprep.subr.mxu0 0.0
    %108 = vmatpush1.msra.mxu0 0.0
    %109 = vmatprep.subr.mxu0 0.0
    %110 = vmatpush1.msra.mxu0 0.0
    %111 = vmatprep.subr.mxu0 0.0
    %112 = vmatpush1.msra.mxu0 0.0
    %113 = vmatprep.subr.mxu0 0.0
    %114 = vmatpush1.msra.mxu0 0.0
    %115 = vmatprep.subr.mxu0 0.0
    %116 = vmatpush1.msra.mxu0 0.0
    %117 = vmatprep.subr.mxu0 0.0
    %118 = vmatpush1.msra.mxu0 0.0
    %119 = vmatprep.subr.mxu0 0.0
    %120 = vmatpush1.msra.mxu0 0.0
    %121 = vmatprep.subr.mxu0 0.0
    %122 = vmatpush1.msra.mxu0 0.0
    %123 = vmatprep.subr.mxu0 0.0
    %124 = vmatpush1.msra.mxu0 0.0
    %125 = vmatprep.subr.mxu0 0.0
    %126 = vmatpush1.msra.mxu0 0.0
    %127 = vmatprep.subr.mxu0 0.0
    %128 = vmatpush1.msra.mxu0 0.0
    %129 = vmatprep.subr.mxu0 0.0
    %130 = vmatpush1.msra.mxu0 0.0
    %131 = vmatprep.subr.mxu0 0.0
    %132 = vmatpush1.msra.mxu0 0.0
    %133 = vmatprep.subr.mxu0 0.0
    %134 = vmatpush1.msra.mxu0 0.0
    %135 = vmatprep.subr.mxu0 0.0
    %136 = vmatpush1.msra.mxu0 0.0
    %137 = vmatprep.subr.mxu0 0.0
    %138 = vmatpush1.msra.mxu0 0.0
    %139 = vmatprep.subr.mxu0 0.0
    %140 = vmatpush1.msra.mxu0 0.0
    %141 = vmatprep.subr.mxu0 0.0
    %142 = vmatpush1.msra.mxu0 0.0
    %143 = vmatprep.subr.mxu0 0.0
    %144 = vmatpush1.msra.mxu0 0.0
    %145 = vmatprep.subr.mxu0 0.0
    %146 = vmatpush1.msra.mxu0 0.0
    %147 = vmatprep.subr.mxu0 0.0
    %148 = vmatpush1.msra.mxu0 0.0
    %149 = vmatprep.mubr.f32.mxu0 0.0
    %150 = vmatmul.mubr.f32.gmra.mrb[0].mxu0 %v80
    %v151 = vpop.f32.mrb[0].mxu0
    %v152 = vadd.f32 %v76, %v151
    %v153 = vpop.f32.mrb[0].mxu0
    %154 = vmatprep.mubr.f32.mxu0 0.0
    %155 = vmatmul.mubr.f32.gmra.mrb[0].mxu0 %v83
    %v156 = vpop.f32.mrb[0].mxu0
    %v157 = vadd.f32 %v76, %v156
    %v158 = vpop.f32.mrb[0].mxu0
    %159 = vdwg.mxu0
    %v160 = vtanh.pop %v152
    %v161 = vtanh.pop %v157
    %v162 = vld [vmem:[#allocation7] sm:$0xff]
    %v163 = vld [vmem:[#allocation7 + $0x8] sm:$0xff]
    %v164 = vld [vmem:[#allocation7 + $0x10] sm:$0xff]
    %v165 = vld [vmem:[#allocation7 + $0x18] sm:$0xff]
    %v166 = vld [vmem:[#allocation7 + $0x20] sm:$0xff]
    %v167 = vld [vmem:[#allocation7 + $0x28] sm:$0xff]
    %v168 = vld [vmem:[#allocation7 + $0x30] sm:$0xff]
    %v169 = vld [vmem:[#allocation7 + $0x38] sm:$0xff]
    %v170 = vld [vmem:[%s4] sm:$0x3]
    %v172 = vlaneseq
    %v173 = vshrl.u32 %v172, 7
    %v174 = vsub.s32 0, %v173
    %v175 = vrot.slane %v170, %v174
    %v176 = vlaneseq
    %v177 = vshrl.u32 %v176, 7
    %v178 = vsub.s32 1, %v177
    %v179 = vrot.slane %v170, %v178
    %v183 = vsel %vm78, %v160, 0
    %v186 = vsel %vm78, %v161, 0
    %188 = vmatprep.subr.mxu0 %v163
    %189 = vmatpush1.msra.mxu0 %v162
    %190 = vmatprep.subr.mxu0 %v165
    %191 = vmatpush1.msra.mxu0 %v164
    %192 = vmatprep.subr.mxu0 %v167
    %193 = vmatpush1.msra.mxu0 %v166
    %194 = vmatprep.subr.mxu0 %v169
    %195 = vmatpush1.msra.mxu0 %v168
    %196 = vmatprep.subr.mxu0 0.0
    %197 = vmatpush1.msra.mxu0 0.0
    %198 = vmatprep.subr.mxu0 0.0
    %199 = vmatpush1.msra.mxu0 0.0
    %200 = vmatprep.subr.mxu0 0.0
    %201 = vmatpush1.msra.mxu0 0.0
    %202 = vmatprep.subr.mxu0 0.0
    %203 = vmatpush1.msra.mxu0 0.0
    %204 = vmatprep.subr.mxu0 0.0
    %205 = vmatpush1.msra.mxu0 0.0
    %206 = vmatprep.subr.mxu0 0.0
    %207 = vmatpush1.msra.mxu0 0.0
    %208 = vmatprep.subr.mxu0 0.0
    %209 = vmatpush1.msra.mxu0 0.0
    %210 = vmatprep.subr.mxu0 0.0
    %211 = vmatpush1.msra.mxu0 0.0
    %212 = vmatprep.subr.mxu0 0.0
    %213 = vmatpush1.msra.mxu0 0.0
    %214 = vmatprep.subr.mxu0 0.0
    %215 = vmatpush1.msra.mxu0 0.0
    %216 = vmatprep.subr.mxu0 0.0
    %217 = vmatpush1.msra.mxu0 0.0
    %218 = vmatprep.subr.mxu0 0.0
    %219 = vmatpush1.msra.mxu0 0.0
    %220 = vmatprep.subr.mxu0 0.0
    %221 = vmatpush1.msra.mxu0 0.0
    %222 = vmatprep.subr.mxu0 0.0
    %223 = vmatpush1.msra.mxu0 0.0
    %224 = vmatprep.subr.mxu0 0.0
    %225 = vmatpush1.msra.mxu0 0.0
    %226 = vmatprep.subr.mxu0 0.0
    %227 = vmatpush1.msra.mxu0 0.0
    %228 = vmatprep.subr.mxu0 0.0
    %229 = vmatpush1.msra.mxu0 0.0
    %230 = vmatprep.subr.mxu0 0.0
    %231 = vmatpush1.msra.mxu0 0.0
    %232 = vmatprep.subr.mxu0 0.0
    %233 = vmatpush1.msra.mxu0 0.0
    %234 = vmatprep.subr.mxu0 0.0
    %235 = vmatpush1.msra.mxu0 0.0
    %236 = vmatprep.subr.mxu0 0.0
    %237 = vmatpush1.msra.mxu0 0.0
    %238 = vmatprep.subr.mxu0 0.0
    %239 = vmatpush1.msra.mxu0 0.0
    %240 = vmatprep.subr.mxu0 0.0
    %241 = vmatpush1.msra.mxu0 0.0
    %242 = vmatprep.subr.mxu0 0.0
    %243 = vmatpush1.msra.mxu0 0.0
    %244 = vmatprep.subr.mxu0 0.0
    %245 = vmatpush1.msra.mxu0 0.0
    %246 = vmatprep.subr.mxu0 0.0
    %247 = vmatpush1.msra.mxu0 0.0
    %248 = vmatprep.subr.mxu0 0.0
    %249 = vmatpush1.msra.mxu0 0.0
    %250 = vmatprep.subr.mxu0 0.0
    %251 = vmatpush1.msra.mxu0 0.0
    %252 = vmatprep.mubr.f32.mxu0 0.0
    %253 = vmatmul.mubr.f32.gmra.mrb[0].mxu0 %v183
    %v254 = vpop.f32.mrb[0].mxu0
    %v255 = vadd.f32 %v175, %v254
    %v256 = vpop.f32.mrb[0].mxu0
    %v257 = vadd.f32 %v179, %v256
    %258 = vmatprep.mubr.f32.mxu0 0.0
    %259 = vmatmul.mubr.f32.gmra.mrb[0].mxu0 %v186
    %v260 = vpop.f32.mrb[0].mxu0
    %v261 = vadd.f32 %v175, %v260
    %v262 = vpop.f32.mrb[0].mxu0
    %v263 = vadd.f32 %v179, %v262
    %264 = vdwg.mxu0
    %v265 = vmax.f32 %v257, 0.0
    %v266 = vmax.f32 %v263, 0.0
    %v267 = vand.u32 2147483647, %v257
    %v268 = vand.u32 2147483647, %v263
    %v269 = vsub.f32 0.0, %v267
    %v270 = vsub.f32 0.0, %v268
    %v271 = vmul.f32 %v269, 1.442695
    %v272 = vpow.pop %v271
    %v273 = vmul.f32 %v270, 1.442695
    %v274 = vpow.pop %v273
    %v275 = vadd.f32 %v272, 1.0
    %v276 = vlog2.pop %v275
    %v277 = vmul.f32 %v276, 0.6931472
    %v278 = vmul.f32 -0.5, %v272
    %v279 = vadd.f32 %v278, 1.0
    %v280 = vmul.f32 %v279, %v272
    %v281 = vand.u32 2147483647, %v272
    %vm282 = vcmp.lt.f32.partialorder %v281, 0.0004427343
    %v283 = vsel %vm282, %v280, %v277
    %v284 = vadd.f32 %v274, 1.0
    %v285 = vlog2.pop %v284
    %v286 = vmul.f32 %v285, 0.6931472
    %v287 = vmul.f32 -0.5, %v274
    %v288 = vadd.f32 %v287, 1.0
    %v289 = vmul.f32 %v288, %v274
    %v290 = vand.u32 2147483647, %v274
    %vm291 = vcmp.lt.f32.partialorder %v290, 0.0004427343
    %v292 = vsel %vm291, %v289, %v286
    %v293 = vadd.f32 %v265, %v283
    %v294 = vadd.f32 %v266, %v292
    %295 = vst [vmem:[#allocation8] sm:$0xff] %v255
    %296 = vst [vmem:[#allocation8 + $0x8] sm:$0xff] %v261
    %297 = vst [vmem:[#allocation9] sm:$0xff] %v293
    %298 = vst [vmem:[#allocation9 + $0x8] sm:$0xff] %v294
    // Predicated region
    $region34: #{tpu_custom_call.1} parent=1 // pred_check
      _
    $region35: #{tpu_custom_call.1} parent=1 // pred_check_branch
      %300 = sbr.rel (0) target = $region37
    $region36: #{tpu_custom_call.1} parent=1 // pred_region
      %s302 = ssub.s32 256, 256
      %303 = vsyncadd [#allocation4], %s302
      %s304 = sshll.u32 [#allocation8], 4
      %s305 = int_to_ptr.vmem [resolvable:$true] %s304
      %310 = dma.vmem_to_hbm [thread:$0]  %s305, 256, %s5, [#allocation4], 128, 128, 8
    $region37: #{tpu_custom_call.1} parent=1 // pred_fallthru
      _
    // Predicated region
    $region38: #{tpu_custom_call.1} parent=1 // pred_check
      _
    $region39: #{tpu_custom_call.1} parent=1 // pred_check_branch
      %312 = sbr.rel (0) target = $region41
    $region40: #{tpu_custom_call.1} parent=1 // pred_region
      %s314 = ssub.s32 256, 256
      %315 = vsyncadd [#allocation10], %s314
      %s316 = sshll.u32 [#allocation9], 4
      %s317 = int_to_ptr.vmem [resolvable:$true] %s316
      %322 = dma.vmem_to_hbm [thread:$0]  %s317, 256, %s6, [#allocation10], 128, 128, 8
    $region41: #{tpu_custom_call.1} parent=1 // pred_fallthru
      _
    // Predicated region
    $region42: #{tpu_custom_call.1} parent=1 // pred_check
      _
    $region43: #{tpu_custom_call.1} parent=1 // pred_check_branch
      %324 = sbr.rel (0) target = $region45
    $region44: #{tpu_custom_call.1} parent=1 // pred_region
      %325 = dma.done [#allocation4], 256
    $region45: #{tpu_custom_call.1} parent=1 // pred_fallthru
      _
    // Predicated region
    $region46: #{tpu_custom_call.1} parent=1 // pred_check
      _
    $region47: #{tpu_custom_call.1} parent=1 // pred_check_branch
      %327 = sbr.rel (0) target = $region49
    $region48: #{tpu_custom_call.1} parent=1 // pred_region
      %328 = dma.done [#allocation10], 256
    $region49: #{tpu_custom_call.1} parent=1 // pred_fallthru
      _
    %329 = vsyncpa [#allocation3], 1
    %330 = vsyncpa [#allocation6], 1
    %331 = vsyncpa [#allocation4], 1
    %332 = vsyncpa [#allocation10], 1

</llo_original>
